<compile_context>
chip_gen: v6e
topology: v6e:2x2x1
jax: 0.10.0
libtpu: 0.0.40
codegen_flags: <defaults>
</compile_context>

<pallas_src>
import functools

import jax
import jax.numpy as jnp
from jax.experimental import pallas as pl
from jax.experimental.pallas import tpu as pltpu


def _round_up(x, m):
    return (x + m - 1) // m * m


def _mlp_fused_kernel(x_ref, *param_and_out_refs, neg_slope, n_layers):
    """Fused forward for the whole MLP on one batch tile.

    Refs: x_ref, w0, b0, w1, b1, ..., w_{L-1}, b_{L-1}, o_ref
    Each w is (Din_pad, Dout_pad), each b is (1, Dout_pad). Intermediates stay
    in registers/VMEM; only the final layer's result is stored.
    """
    o_ref = param_and_out_refs[-1]
    params = param_and_out_refs[:-1]

    h = x_ref[...]
    for i in range(n_layers):
        w = params[2 * i][...]
        b = params[2 * i + 1][...]
        h = jnp.dot(h, w, preferred_element_type=jnp.float32) + b
        if i < n_layers - 1:
            # LeakyReLU (VPU select, no EUP/XLU traffic)
            h = jnp.where(h > 0, h, neg_slope * h)
    o_ref[...] = h.astype(o_ref.dtype)


@functools.partial(jax.jit, static_argnames=("neg_slope", "n_classes"))
def _mlp_forward_jit(x, weights_t_pad, biases_pad, *, neg_slope, n_classes):
    """pad -> fused pallas kernel -> slice, all inside one jitted program."""
    B, Din = x.shape
    n_layers = len(weights_t_pad)
    Din_pad = weights_t_pad[0].shape[0]
    Dout_pad = weights_t_pad[-1].shape[1]

    # Batch tile: multiple of 8 (f32 sublane); cap at 256 so large batches get
    # a pipelined grid instead of one giant VMEM block.
    TB = 256 if B >= 256 else _round_up(B, 8)
    B_pad = _round_up(B, TB)

    # Zero-pad input only if needed (shapes are static under jit).
    if B_pad != B or Din_pad != Din:
        x_pad = jnp.zeros((B_pad, Din_pad), dtype=x.dtype)
        x_pad = x_pad.at[:B, :Din].set(x)
    else:
        x_pad = x

    kernel = functools.partial(_mlp_fused_kernel,
                               neg_slope=neg_slope, n_layers=n_layers)

    # x / output tiled over the batch grid; weights & biases grid-invariant
    # (index_map -> (0, 0)) so they stay resident in VMEM across tiles.
    in_specs = [pl.BlockSpec((TB, Din_pad), lambda i: (i, 0))]
    args = [x_pad]
    for w, b in zip(weights_t_pad, biases_pad):
        in_specs.append(pl.BlockSpec(w.shape, lambda i: (0, 0)))
        in_specs.append(pl.BlockSpec(b.shape, lambda i: (0, 0)))
        args.append(w)
        args.append(b)

    out_pad = pl.pallas_call(
        kernel,
        out_shape=jax.ShapeDtypeStruct((B_pad, Dout_pad), x.dtype),
        grid=(B_pad // TB,),
        in_specs=in_specs,
        out_specs=pl.BlockSpec((TB, Dout_pad), lambda i: (i, 0)),
        compiler_params=pltpu.CompilerParams(
            dimension_semantics=("parallel",)),
    )(*args)

    return out_pad[:B, :n_classes]


class MLP:
    """JAX/Pallas re-implementation of the PyTorch MLP module."""

    def __init__(self, n_inputs, n_hidden, n_classes, neg_slope, key):
        nodes = [n_inputs] + list(n_hidden) + [n_classes]
        self.neg_slope = float(neg_slope)
        self.n_classes = int(n_classes)

        # Raw params in PyTorch nn.Linear convention (reference path).
        self.weights = []
        self.biases = []
        # Kernel-ready params: pre-transposed + zero-padded to lane width,
        # built ONCE here (no per-forward transpose/reshape HLO ops).
        self.weights_t_pad = []
        self.biases_pad = []

        for i in range(len(nodes) - 1):
            key, sub = jax.random.split(key)
            din, dout = nodes[i], nodes[i + 1]
            # matches nn.init.normal_(weight, std=0.0001), zeros_(bias)
            w = 0.0001 * jax.random.normal(sub, (dout, din), dtype=jnp.float32)
            b = jnp.zeros((dout,), dtype=jnp.float32)
            self.weights.append(w)
            self.biases.append(b)

            din_p = _round_up(din, 128)
            dout_p = _round_up(dout, 128)
            w_t_pad = jnp.zeros((din_p, dout_p), jnp.float32)
            w_t_pad = w_t_pad.at[:din, :dout].set(w.T)
            b_pad = jnp.zeros((1, dout_p), jnp.float32)
            b_pad = b_pad.at[0, :dout].set(b)
            self.weights_t_pad.append(w_t_pad)
            self.biases_pad.append(b_pad)

    def forward(self, x):
        return _mlp_forward_jit(x, self.weights_t_pad, self.biases_pad,
                                neg_slope=self.neg_slope,
                                n_classes=self.n_classes)

    # pure-JAX reference for correctness checking
    def forward_ref(self, x):
        n_layers = len(self.weights)
        for i in range(n_layers - 1):
            x = x @ self.weights[i].T + self.biases[i]
            x = jnp.where(x > 0, x, self.neg_slope * x)
        return x @ self.weights[-1].T + self.biases[-1]


if __name__ == "__main__":
    key = jax.random.PRNGKey(0)
    k_param, k_x = jax.random.split(key)

    batch = 2
    n_inputs = 64
    n_hidden = [32, 32]
    n_classes = 10
    neg_slope = 0.02

    mlp = MLP(n_inputs, n_hidden, n_classes, neg_slope, k_param)

    x = jax.random.normal(k_x, (batch, n_inputs), dtype=jnp.float32)

    out = jax.block_until_ready(mlp.forward(x))
    ref = jax.block_until_ready(mlp.forward_ref(x))

    assert out.shape == (batch, n_classes)
    assert jnp.allclose(out, ref, atol=1e-5, rtol=1e-5)

    print("KERNEL_OK")
</pallas_src>

<mosaic_0001>
module attributes {stable_mosaic.version = 11 : i64} {
  func.func @_mlp_fused_kernel(%arg0: i32, %arg1: memref<8x128xf32, #tpu.memory_space<vmem>>, %arg2: memref<128x128xf32, #tpu.memory_space<vmem>>, %arg3: memref<1x128xf32, #tpu.memory_space<vmem>>, %arg4: memref<128x128xf32, #tpu.memory_space<vmem>>, %arg5: memref<1x128xf32, #tpu.memory_space<vmem>>, %arg6: memref<128x128xf32, #tpu.memory_space<vmem>>, %arg7: memref<1x128xf32, #tpu.memory_space<vmem>>, %arg8: memref<8x128xf32, #tpu.memory_space<vmem>>) attributes {dimension_semantics = [#tpu.dimension_semantics<parallel>], iteration_bounds = array<i64: 1>, scalar_prefetch = 0 : i64, scratch_operands = 0 : i64, tpu.core_type = #tpu.core_type<tc>, window_params = [{transform_indices = @transform_0, window_bounds = array<i64: 8, 128>}, {pipeline_mode = #tpu.pipeline_mode<synchronous>, transform_indices = @transform_1, window_bounds = array<i64: 128, 128>}, {pipeline_mode = #tpu.pipeline_mode<synchronous>, transform_indices = @transform_2, window_bounds = array<i64: 1, 128>}, {pipeline_mode = #tpu.pipeline_mode<synchronous>, transform_indices = @transform_3, window_bounds = array<i64: 128, 128>}, {pipeline_mode = #tpu.pipeline_mode<synchronous>, transform_indices = @transform_4, window_bounds = array<i64: 1, 128>}, {pipeline_mode = #tpu.pipeline_mode<synchronous>, transform_indices = @transform_5, window_bounds = array<i64: 128, 128>}, {pipeline_mode = #tpu.pipeline_mode<synchronous>, transform_indices = @transform_6, window_bounds = array<i64: 1, 128>}, {transform_indices = @transform_7, window_bounds = array<i64: 8, 128>}]} {
    %c0 = arith.constant 0 : index
    %c0_0 = arith.constant 0 : index
    %0 = vector.load %arg1[%c0, %c0_0] : memref<8x128xf32, #tpu.memory_space<vmem>>, vector<8x128xf32>
    %c0_1 = arith.constant 0 : index
    %c0_2 = arith.constant 0 : index
    %1 = vector.load %arg2[%c0_1, %c0_2] : memref<128x128xf32, #tpu.memory_space<vmem>>, vector<128x128xf32>
    %c0_3 = arith.constant 0 : index
    %c0_4 = arith.constant 0 : index
    %2 = vector.load %arg3[%c0_3, %c0_4] : memref<1x128xf32, #tpu.memory_space<vmem>>, vector<1x128xf32>
    %cst = arith.constant dense<0.000000e+00> : vector<8x128xf32>
    %3 = tpu.matmul %0, %1, %cst {dimension_numbers = #tpu.dot_dimension_numbers<[1], [0], [0], [1], [0, 0, 1, 1], [], []>} : vector<8x128xf32>, vector<128x128xf32>, vector<8x128xf32> -> vector<8x128xf32>
    %4 = vector.broadcast %2 : vector<1x128xf32> to vector<8x128xf32>
    %5 = arith.addf %3, %4 : vector<8x128xf32>
    %cst_5 = arith.constant 0.000000e+00 : f32
    %6 = vector.broadcast %cst_5 : f32 to vector<8x128xf32>
    %7 = arith.cmpf ogt, %5, %6 : vector<8x128xf32>
    %cst_6 = arith.constant 2.000000e-02 : f32
    %8 = vector.broadcast %cst_6 : f32 to vector<8x128xf32>
    %9 = arith.mulf %8, %5 : vector<8x128xf32>
    %10 = arith.select %7, %5, %9 : vector<8x128xi1>, vector<8x128xf32>
    %c0_7 = arith.constant 0 : index
    %c0_8 = arith.constant 0 : index
    %11 = vector.load %arg4[%c0_7, %c0_8] : memref<128x128xf32, #tpu.memory_space<vmem>>, vector<128x128xf32>
    %c0_9 = arith.constant 0 : index
    %c0_10 = arith.constant 0 : index
    %12 = vector.load %arg5[%c0_9, %c0_10] : memref<1x128xf32, #tpu.memory_space<vmem>>, vector<1x128xf32>
    %cst_11 = arith.constant dense<0.000000e+00> : vector<8x128xf32>
    %13 = tpu.matmul %10, %11, %cst_11 {dimension_numbers = #tpu.dot_dimension_numbers<[1], [0], [0], [1], [0, 0, 1, 1], [], []>} : vector<8x128xf32>, vector<128x128xf32>, vector<8x128xf32> -> vector<8x128xf32>
    %14 = vector.broadcast %12 : vector<1x128xf32> to vector<8x128xf32>
    %15 = arith.addf %13, %14 : vector<8x128xf32>
    %cst_12 = arith.constant 0.000000e+00 : f32
    %16 = vector.broadcast %cst_12 : f32 to vector<8x128xf32>
    %17 = arith.cmpf ogt, %15, %16 : vector<8x128xf32>
    %cst_13 = arith.constant 2.000000e-02 : f32
    %18 = vector.broadcast %cst_13 : f32 to vector<8x128xf32>
    %19 = arith.mulf %18, %15 : vector<8x128xf32>
    %20 = arith.select %17, %15, %19 : vector<8x128xi1>, vector<8x128xf32>
    %c0_14 = arith.constant 0 : index
    %c0_15 = arith.constant 0 : index
    %21 = vector.load %arg6[%c0_14, %c0_15] : memref<128x128xf32, #tpu.memory_space<vmem>>, vector<128x128xf32>
    %c0_16 = arith.constant 0 : index
    %c0_17 = arith.constant 0 : index
    %22 = vector.load %arg7[%c0_16, %c0_17] : memref<1x128xf32, #tpu.memory_space<vmem>>, vector<1x128xf32>
    %cst_18 = arith.constant dense<0.000000e+00> : vector<8x128xf32>
    %23 = tpu.matmul %20, %21, %cst_18 {dimension_numbers = #tpu.dot_dimension_numbers<[1], [0], [0], [1], [0, 0, 1, 1], [], []>} : vector<8x128xf32>, vector<128x128xf32>, vector<8x128xf32> -> vector<8x128xf32>
    %24 = vector.broadcast %22 : vector<1x128xf32> to vector<8x128xf32>
    %25 = arith.addf %23, %24 : vector<8x128xf32>
    %c0_19 = arith.constant 0 : index
    %c0_20 = arith.constant 0 : index
    %26 = vector.load %arg8[%c0_19, %c0_20] : memref<8x128xf32, #tpu.memory_space<vmem>>, vector<8x128xf32>
    tpu.vector_store %arg8[%c0_19, %c0_20], %25 {strides = array<i32>} : memref<8x128xf32, #tpu.memory_space<vmem>>, vector<8x128xf32>,
    return
  }
  func.func @transform_0(%arg0: i32) -> (i32, i32) {
    %c0_i32 = arith.constant 0 : i32
    %c0_i32_0 = arith.constant 0 : i32
    return %arg0, %c0_i32 : i32, i32
  }
  func.func @transform_1(%arg0: i32) -> (i32, i32) {
    %c0_i32 = arith.constant 0 : i32
    %c0_i32_0 = arith.constant 0 : i32
    %c0_i32_1 = arith.constant 0 : i32
    return %c0_i32, %c0_i32_0 : i32, i32
  }
  func.func @transform_2(%arg0: i32) -> (i32, i32) {
    %c0_i32 = arith.constant 0 : i32
    %c0_i32_0 = arith.constant 0 : i32
    %c0_i32_1 = arith.constant 0 : i32
    return %c0_i32, %c0_i32_0 : i32, i32
  }
  func.func @transform_3(%arg0: i32) -> (i32, i32) {
    %c0_i32 = arith.constant 0 : i32
    %c0_i32_0 = arith.constant 0 : i32
    %c0_i32_1 = arith.constant 0 : i32
    return %c0_i32, %c0_i32_0 : i32, i32
  }
  func.func @transform_4(%arg0: i32) -> (i32, i32) {
    %c0_i32 = arith.constant 0 : i32
    %c0_i32_0 = arith.constant 0 : i32
    %c0_i32_1 = arith.constant 0 : i32
    return %c0_i32, %c0_i32_0 : i32, i32
  }
  func.func @transform_5(%arg0: i32) -> (i32, i32) {
    %c0_i32 = arith.constant 0 : i32
    %c0_i32_0 = arith.constant 0 : i32
    %c0_i32_1 = arith.constant 0 : i32
    return %c0_i32, %c0_i32_0 : i32, i32
  }
  func.func @transform_6(%arg0: i32) -> (i32, i32) {
    %c0_i32 = arith.constant 0 : i32
    %c0_i32_0 = arith.constant 0 : i32
    %c0_i32_1 = arith.constant 0 : i32
    return %c0_i32, %c0_i32_0 : i32, i32
  }
  func.func @transform_7(%arg0: i32) -> (i32, i32) {
    %c0_i32 = arith.constant 0 : i32
    %c0_i32_0 = arith.constant 0 : i32
    return %arg0, %c0_i32 : i32, i32
  }
}

</mosaic_0001>

<llo_original>
// kernel: _mlp_forward_jit.1
$region0: #{_mlp_forward_jit.1}
  #allocation0 [shape = 'u32[]', space=smem, size = 0x4, offset = 0x4, fixed_abs, tag = 'smem constant byte address 0x4 - core index']
  #allocation1 [shape = 'u32[144,128]{1,0:T(1,128)}', space=vmem, size = 0x12000, scoped, tag = 'internal scratch']
  %s0 = inlined_call_operand.vmem [shape: f32[8,128], index: 0, kind: input, shape index: {}]
  %s1 = inlined_call_operand.hbm [shape: f32[128,128], index: 1, kind: input, shape index: {}]
  %s2 = inlined_call_operand.vmem [shape: f32[1,128], index: 2, kind: input, shape index: {}]
  %s3 = inlined_call_operand.hbm [shape: f32[128,128], index: 3, kind: input, shape index: {}]
  %s4 = inlined_call_operand.vmem [shape: f32[1,128], index: 4, kind: input, shape index: {}]
  %s5 = inlined_call_operand.hbm [shape: f32[128,128], index: 5, kind: input, shape index: {}]
  %s6 = inlined_call_operand.vmem [shape: f32[1,128], index: 6, kind: input, shape index: {}]
  %s7 = inlined_call_operand.vmem [shape: f32[8,128], index: 7, kind: output, shape index: {}]
  %s8 = sld [smem:[#allocation0]]
  $region50: #{_mlp_forward_jit.1} parent=0
    _
  %s10 = ssub.s32 1, %s8
  %s11 = scalar_select 0, %s10, %s8
  $region1: #{_mlp_forward_jit.1} parent=0
    #allocation2 [shape = 'u8[65536]{0}', space=vmem, size = 0x10000, scoped, tag = 'input window, operand 1, single buffered']
    #allocation3 [shape = 's32[1]{0}', space=sflag, size = 0x4, scoped, tag = 'scoped memory for _mlp_forward_jit.1']
    #allocation4 [shape = 'u8[65536]{0}', space=vmem, size = 0x10000, scoped, tag = 'input window, operand 3, single buffered']
    #allocation5 [shape = 's32[1]{0}', space=sflag, size = 0x4, scoped, tag = 'scoped memory for _mlp_forward_jit.1']
    #allocation6 [shape = 'u8[65536]{0}', space=vmem, size = 0x10000, scoped, tag = 'input window, operand 5, single buffered']
    %12 = vsyncpa [#allocation3], 0
    %13 = vsyncpa [#allocation5], 0
    // Predicated region
    $region2: #{_mlp_forward_jit.1} parent=1 // pred_check
      _
    $region3: #{_mlp_forward_jit.1} parent=1 // pred_check_branch
      %15 = sbr.rel (0) target = $region5
    $region4: #{_mlp_forward_jit.1} parent=1 // pred_region
      _
    $region5: #{_mlp_forward_jit.1} parent=1 // pred_fallthru
      _
    // Predicated region
    $region6: #{_mlp_forward_jit.1} parent=1 // pred_check
      _
    $region7: #{_mlp_forward_jit.1} parent=1 // pred_check_branch
      %17 = sbr.rel (0) target = $region9
    $region8: #{_mlp_forward_jit.1} parent=1 // pred_region
      %s19 = ssub.s32 2048, 2048
      %20 = vsyncadd [#allocation3], %s19
      %s21 = sshll.u32 [#allocation2], 4
      %s22 = int_to_ptr.vmem [resolvable:$true] %s21
      %27 = dma.hbm_to_vmem [thread:$0]  %s1, 2048, %s22, [#allocation3], 128, 128, 8
    $region9: #{_mlp_forward_jit.1} parent=1 // pred_fallthru
      _
    // Predicated region
    $region10: #{_mlp_forward_jit.1} parent=1 // pred_check
      _
    $region11: #{_mlp_forward_jit.1} parent=1 // pred_check_branch
      %29 = sbr.rel (0) target = $region13
    $region12: #{_mlp_forward_jit.1} parent=1 // pred_region
      _
    $region13: #{_mlp_forward_jit.1} parent=1 // pred_fallthru
      _
    // Predicated region
    $region14: #{_mlp_forward_jit.1} parent=1 // pred_check
      _
    $region15: #{_mlp_forward_jit.1} parent=1 // pred_check_branch
      %31 = sbr.rel (0) target = $region17
    $region16: #{_mlp_forward_jit.1} parent=1 // pred_region
      %s33 = ssub.s32 2048, 2048
      %34 = vsyncadd [#allocation5], %s33
      %s35 = sshll.u32 [#allocation4], 4
      %s36 = int_to_ptr.vmem [resolvable:$true] %s35
      %41 = dma.hbm_to_vmem [thread:$0]  %s3, 2048, %s36, [#allocation5], 128, 128, 8
    $region17: #{_mlp_forward_jit.1} parent=1 // pred_fallthru
      _
    // Predicated region
    $region18: #{_mlp_forward_jit.1} parent=1 // pred_check
      _
    $region19: #{_mlp_forward_jit.1} parent=1 // pred_check_branch
      %43 = sbr.rel (0) target = $region21
    $region20: #{_mlp_forward_jit.1} parent=1 // pred_region
      _
    $region21: #{_mlp_forward_jit.1} parent=1 // pred_fallthru
      _
    // Predicated region
    $region22: #{_mlp_forward_jit.1} parent=1 // pred_check
      _
    $region23: #{_mlp_forward_jit.1} parent=1 // pred_check_branch
      %45 = sbr.rel (0) target = $region25
    $region24: #{_mlp_forward_jit.1} parent=1 // pred_region
      %s47 = ssub.s32 2048, 2048
      %48 = vsyncadd [#allocation5], %s47
      %s49 = sshll.u32 [#allocation6], 4
      %s50 = int_to_ptr.vmem [resolvable:$true] %s49
      %55 = dma.hbm_to_vmem [thread:$0]  %s5, 2048, %s50, [#allocation5], 128, 128, 8
    $region25: #{_mlp_forward_jit.1} parent=1 // pred_fallthru
      _
    // Predicated region
    $region26: #{_mlp_forward_jit.1} parent=1 // pred_check
      _
    $region27: #{_mlp_forward_jit.1} parent=1 // pred_check_branch
      %57 = sbr.rel (0) target = $region29
    $region28: #{_mlp_forward_jit.1} parent=1 // pred_region
      _
    $region29: #{_mlp_forward_jit.1} parent=1 // pred_fallthru
      _
    // Predicated region
    $region30: #{_mlp_forward_jit.1} parent=1 // pred_check
      _
    $region31: #{_mlp_forward_jit.1} parent=1 // pred_check_branch
      %59 = sbr.rel (0) target = $region33
    $region32: #{_mlp_forward_jit.1} parent=1 // pred_region
      %60 = dma.done [#allocation3], 2048
    $region33: #{_mlp_forward_jit.1} parent=1 // pred_fallthru
      _
    // Predicated region
    $region34: #{_mlp_forward_jit.1} parent=1 // pred_check
      _
    $region35: #{_mlp_forward_jit.1} parent=1 // pred_check_branch
      %62 = sbr.rel (0) target = $region37
    $region36: #{_mlp_forward_jit.1} parent=1 // pred_region
      %63 = dma.done [#allocation5], 2048
    $region37: #{_mlp_forward_jit.1} parent=1 // pred_fallthru
      _
    // Predicated region
    $region38: #{_mlp_forward_jit.1} parent=1 // pred_check
      _
    $region39: #{_mlp_forward_jit.1} parent=1 // pred_check_branch
      %65 = sbr.rel (0) target = $region41
    $region40: #{_mlp_forward_jit.1} parent=1 // pred_region
      %66 = dma.done [#allocation5], 2048
    $region41: #{_mlp_forward_jit.1} parent=1 // pred_fallthru
      _
    %v67 = vld [vmem:[%s0] sm:$0xff]
    %v68 = vld [vmem:[#allocation2] sm:$0xff]
    %v69 = vld [vmem:[#allocation2 + $0x8] sm:$0xff]
    %v70 = vld [vmem:[#allocation2 + $0x10] sm:$0xff]
    %v71 = vld [vmem:[#allocation2 + $0x18] sm:$0xff]
    %v72 = vld [vmem:[#allocation2 + $0x20] sm:$0xff]
    %v73 = vld [vmem:[#allocation2 + $0x28] sm:$0xff]
    %v74 = vld [vmem:[#allocation2 + $0x30] sm:$0xff]
    %v75 = vld [vmem:[#allocation2 + $0x38] sm:$0xff]
    %v76 = vld [vmem:[#allocation2 + $0x40] sm:$0xff]
    %v77 = vld [vmem:[#allocation2 + $0x48] sm:$0xff]
    %v78 = vld [vmem:[#allocation2 + $0x50] sm:$0xff]
    %v79 = vld [vmem:[#allocation2 + $0x58] sm:$0xff]
    %v80 = vld [vmem:[#allocation2 + $0x60] sm:$0xff]
    %v81 = vld [vmem:[#allocation2 + $0x68] sm:$0xff]
    %v82 = vld [vmem:[#allocation2 + $0x70] sm:$0xff]
    %v83 = vld [vmem:[#allocation2 + $0x78] sm:$0xff]
    %v84 = vld [vmem:[%s2] sm:$0x1]
    %v86 = vlaneseq
    %v87 = vshrl.u32 %v86, 7
    %v88 = vsub.s32 0, %v87
    %v89 = vrot.slane %v84, %v88
    %91 = vmatprep.subr.mxu0 0.0
    %92 = vmatpush1.msra.mxu0 %v83
    %93 = vmatprep.subr.mxu0 0.0
    %94 = vmatpush1.msra.mxu0 %v82
    %95 = vmatprep.subr.mxu0 0.0
    %96 = vmatpush1.msra.mxu0 %v81
    %97 = vmatprep.subr.mxu0 0.0
    %98 = vmatpush1.msra.mxu0 %v80
    %99 = vmatprep.subr.mxu0 0.0
    %100 = vmatpush1.msra.mxu0 %v79
    %101 = vmatprep.subr.mxu0 0.0
    %102 = vmatpush1.msra.mxu0 %v78
    %103 = vmatprep.subr.mxu0 0.0
    %104 = vmatpush1.msra.mxu0 %v77
    %105 = vmatprep.subr.mxu0 0.0
    %106 = vmatpush1.msra.mxu0 %v76
    %107 = vmatprep.subr.mxu0 0.0
    %108 = vmatpush1.msra.mxu0 %v75
    %109 = vmatprep.subr.mxu0 0.0
    %110 = vmatpush1.msra.mxu0 %v74
    %111 = vmatprep.subr.mxu0 0.0
    %112 = vmatpush1.msra.mxu0 %v73
    %113 = vmatprep.subr.mxu0 0.0
    %114 = vmatpush1.msra.mxu0 %v72
    %115 = vmatprep.subr.mxu0 0.0
    %116 = vmatpush1.msra.mxu0 %v71
    %117 = vmatprep.subr.mxu0 0.0
    %118 = vmatpush1.msra.mxu0 %v70
    %119 = vmatprep.subr.mxu0 0.0
    %120 = vmatpush1.msra.mxu0 %v69
    %121 = vmatprep.subr.mxu0 0.0
    %122 = vmatpush1.msra.mxu0 %v68
    %123 = vmatprep.subr.mxu0 0.0
    %124 = vmatpush2.msra.mxu0 0.0
    %125 = vmatprep.subr.mxu0 0.0
    %126 = vmatpush2.msra.mxu0 0.0
    %127 = vmatprep.subr.mxu0 0.0
    %128 = vmatpush2.msra.mxu0 0.0
    %129 = vmatprep.subr.mxu0 0.0
    %130 = vmatpush2.msra.mxu0 0.0
    %131 = vmatprep.subr.mxu0 0.0
    %132 = vmatpush2.msra.mxu0 0.0
    %133 = vmatprep.subr.mxu0 0.0
    %134 = vmatpush2.msra.mxu0 0.0
    %135 = vmatprep.subr.mxu0 0.0
    %136 = vmatpush2.msra.mxu0 0.0
    %137 = vmatprep.subr.mxu0 0.0
    %138 = vmatpush2.msra.mxu0 0.0
    %139 = vmatprep.subr.mxu0 0.0
    %140 = vmatpush2.msra.mxu0 0.0
    %141 = vmatprep.subr.mxu0 0.0
    %142 = vmatpush2.msra.mxu0 0.0
    %143 = vmatprep.subr.mxu0 0.0
    %144 = vmatpush2.msra.mxu0 0.0
    %145 = vmatprep.subr.mxu0 0.0
    %146 = vmatpush2.msra.mxu0 0.0
    %147 = vmatprep.subr.mxu0 0.0
    %148 = vmatpush2.msra.mxu0 0.0
    %149 = vmatprep.subr.mxu0 0.0
    %150 = vmatpush2.msra.mxu0 0.0
    %151 = vmatprep.subr.mxu0 0.0
    %152 = vmatpush2.msra.mxu0 0.0
    %153 = vmatprep.subr.mxu0 0.0
    %154 = vmatpush2.msra.mxu0 0.0
    %155 = vmatprep.mubr.f32.mxu0 0.0
    %156 = vmatmul.mubr.f32.gmra.mxu0 %v67
    %v157 = vpop.f32.mrf.mxu0
    %v158 = vadd.f32 %v89, %v157
    %v159 = vpop.f32.mrf.mxu0
    %160 = vdwg.mxu0
    %vm161 = vcmp.gt.f32.partialorder %v158, 0.0
    %v162 = vmul.f32 %v158, 0.02
    %v163 = vsel %vm161, %v158, %v162
    %v164 = vld [vmem:[#allocation4] sm:$0xff]
    %v165 = vld [vmem:[#allocation4 + $0x8] sm:$0xff]
    %v166 = vld [vmem:[#allocation4 + $0x10] sm:$0xff]
    %v167 = vld [vmem:[#allocation4 + $0x18] sm:$0xff]
    %v168 = vld [vmem:[#allocation4 + $0x20] sm:$0xff]
    %v169 = vld [vmem:[#allocation4 + $0x28] sm:$0xff]
    %v170 = vld [vmem:[#allocation4 + $0x30] sm:$0xff]
    %v171 = vld [vmem:[#allocation4 + $0x38] sm:$0xff]
    %v172 = vld [vmem:[#allocation4 + $0x40] sm:$0xff]
    %v173 = vld [vmem:[#allocation4 + $0x48] sm:$0xff]
    %v174 = vld [vmem:[#allocation4 + $0x50] sm:$0xff]
    %v175 = vld [vmem:[#allocation4 + $0x58] sm:$0xff]
    %v176 = vld [vmem:[#allocation4 + $0x60] sm:$0xff]
    %v177 = vld [vmem:[#allocation4 + $0x68] sm:$0xff]
    %v178 = vld [vmem:[#allocation4 + $0x70] sm:$0xff]
    %v179 = vld [vmem:[#allocation4 + $0x78] sm:$0xff]
    %v180 = vld [vmem:[%s4] sm:$0x1]
    %v182 = vlaneseq
    %v183 = vshrl.u32 %v182, 7
    %v184 = vsub.s32 0, %v183
    %v185 = vrot.slane %v180, %v184
    %187 = vmatprep.subr.mxu0 0.0
    %188 = vmatpush1.msra.mxu0 %v179
    %189 = vmatprep.subr.mxu0 0.0
    %190 = vmatpush1.msra.mxu0 %v178
    %191 = vmatprep.subr.mxu0 0.0
    %192 = vmatpush1.msra.mxu0 %v177
    %193 = vmatprep.subr.mxu0 0.0
    %194 = vmatpush1.msra.mxu0 %v176
    %195 = vmatprep.subr.mxu0 0.0
    %196 = vmatpush1.msra.mxu0 %v175
    %197 = vmatprep.subr.mxu0 0.0
    %198 = vmatpush1.msra.mxu0 %v174
    %199 = vmatprep.subr.mxu0 0.0
    %200 = vmatpush1.msra.mxu0 %v173
    %201 = vmatprep.subr.mxu0 0.0
    %202 = vmatpush1.msra.mxu0 %v172
    %203 = vmatprep.subr.mxu0 0.0
    %204 = vmatpush1.msra.mxu0 %v171
    %205 = vmatprep.subr.mxu0 0.0
    %206 = vmatpush1.msra.mxu0 %v170
    %207 = vmatprep.subr.mxu0 0.0
    %208 = vmatpush1.msra.mxu0 %v169
    %209 = vmatprep.subr.mxu0 0.0
    %210 = vmatpush1.msra.mxu0 %v168
    %211 = vmatprep.subr.mxu0 0.0
    %212 = vmatpush1.msra.mxu0 %v167
    %213 = vmatprep.subr.mxu0 0.0
    %214 = vmatpush1.msra.mxu0 %v166
    %215 = vmatprep.subr.mxu0 0.0
    %216 = vmatpush1.msra.mxu0 %v165
    %217 = vmatprep.subr.mxu0 0.0
    %218 = vmatpush1.msra.mxu0 %v164
    %219 = vmatprep.subr.mxu0 0.0
    %220 = vmatpush2.msra.mxu0 0.0
    %221 = vmatprep.subr.mxu0 0.0
    %222 = vmatpush2.msra.mxu0 0.0
    %223 = vmatprep.subr.mxu0 0.0
    %224 = vmatpush2.msra.mxu0 0.0
    %225 = vmatprep.subr.mxu0 0.0
    %226 = vmatpush2.msra.mxu0 0.0
    %227 = vmatprep.subr.mxu0 0.0
    %228 = vmatpush2.msra.mxu0 0.0
    %229 = vmatprep.subr.mxu0 0.0
    %230 = vmatpush2.msra.mxu0 0.0
    %231 = vmatprep.subr.mxu0 0.0
    %232 = vmatpush2.msra.mxu0 0.0
    %233 = vmatprep.subr.mxu0 0.0
    %234 = vmatpush2.msra.mxu0 0.0
    %235 = vmatprep.subr.mxu0 0.0
    %236 = vmatpush2.msra.mxu0 0.0
    %237 = vmatprep.subr.mxu0 0.0
    %238 = vmatpush2.msra.mxu0 0.0
    %239 = vmatprep.subr.mxu0 0.0
    %240 = vmatpush2.msra.mxu0 0.0
    %241 = vmatprep.subr.mxu0 0.0
    %242 = vmatpush2.msra.mxu0 0.0
    %243 = vmatprep.subr.mxu0 0.0
    %244 = vmatpush2.msra.mxu0 0.0
    %245 = vmatprep.subr.mxu0 0.0
    %246 = vmatpush2.msra.mxu0 0.0
    %247 = vmatprep.subr.mxu0 0.0
    %248 = vmatpush2.msra.mxu0 0.0
    %249 = vmatprep.subr.mxu0 0.0
    %250 = vmatpush2.msra.mxu0 0.0
    %251 = vmatprep.mubr.f32.mxu0 0.0
    %252 = vmatmul.mubr.f32.gmra.mxu0 %v163
    %v253 = vpop.f32.mrf.mxu0
    %v254 = vadd.f32 %v185, %v253
    %v255 = vpop.f32.mrf.mxu0
    %256 = vdwg.mxu0
    %vm257 = vcmp.gt.f32.partialorder %v254, 0.0
    %v258 = vmul.f32 %v254, 0.02
    %v259 = vsel %vm257, %v254, %v258
    %v260 = vld [vmem:[#allocation6] sm:$0xff]
    %v261 = vld [vmem:[#allocation6 + $0x8] sm:$0xff]
    %v262 = vld [vmem:[#allocation6 + $0x10] sm:$0xff]
    %v263 = vld [vmem:[#allocation6 + $0x18] sm:$0xff]
    %v264 = vld [vmem:[#allocation6 + $0x20] sm:$0xff]
    %v265 = vld [vmem:[#allocation6 + $0x28] sm:$0xff]
    %v266 = vld [vmem:[#allocation6 + $0x30] sm:$0xff]
    %v267 = vld [vmem:[#allocation6 + $0x38] sm:$0xff]
    %v268 = vld [vmem:[#allocation6 + $0x40] sm:$0xff]
    %v269 = vld [vmem:[#allocation6 + $0x48] sm:$0xff]
    %v270 = vld [vmem:[#allocation6 + $0x50] sm:$0xff]
    %v271 = vld [vmem:[#allocation6 + $0x58] sm:$0xff]
    %v272 = vld [vmem:[#allocation6 + $0x60] sm:$0xff]
    %v273 = vld [vmem:[#allocation6 + $0x68] sm:$0xff]
    %v274 = vld [vmem:[#allocation6 + $0x70] sm:$0xff]
    %v275 = vld [vmem:[#allocation6 + $0x78] sm:$0xff]
    %v276 = vld [vmem:[%s6] sm:$0x1]
    %v278 = vlaneseq
    %v279 = vshrl.u32 %v278, 7
    %v280 = vsub.s32 0, %v279
    %v281 = vrot.slane %v276, %v280
    %283 = vmatprep.subr.mxu0 0.0
    %284 = vmatpush1.msra.mxu0 %v275
    %285 = vmatprep.subr.mxu0 0.0
    %286 = vmatpush1.msra.mxu0 %v274
    %287 = vmatprep.subr.mxu0 0.0
    %288 = vmatpush1.msra.mxu0 %v273
    %289 = vmatprep.subr.mxu0 0.0
    %290 = vmatpush1.msra.mxu0 %v272
    %291 = vmatprep.subr.mxu0 0.0
    %292 = vmatpush1.msra.mxu0 %v271
    %293 = vmatprep.subr.mxu0 0.0
    %294 = vmatpush1.msra.mxu0 %v270
    %295 = vmatprep.subr.mxu0 0.0
    %296 = vmatpush1.msra.mxu0 %v269
    %297 = vmatprep.subr.mxu0 0.0
    %298 = vmatpush1.msra.mxu0 %v268
    %299 = vmatprep.subr.mxu0 0.0
    %300 = vmatpush1.msra.mxu0 %v267
    %301 = vmatprep.subr.mxu0 0.0
    %302 = vmatpush1.msra.mxu0 %v266
    %303 = vmatprep.subr.mxu0 0.0
    %304 = vmatpush1.msra.mxu0 %v265
    %305 = vmatprep.subr.mxu0 0.0
    %306 = vmatpush1.msra.mxu0 %v264
    %307 = vmatprep.subr.mxu0 0.0
    %308 = vmatpush1.msra.mxu0 %v263
    %309 = vmatprep.subr.mxu0 0.0
    %310 = vmatpush1.msra.mxu0 %v262
    %311 = vmatprep.subr.mxu0 0.0
    %312 = vmatpush1.msra.mxu0 %v261
    %313 = vmatprep.subr.mxu0 0.0
    %314 = vmatpush1.msra.mxu0 %v260
    %315 = vmatprep.subr.mxu0 0.0
    %316 = vmatpush2.msra.mxu0 0.0
    %317 = vmatprep.subr.mxu0 0.0
    %318 = vmatpush2.msra.mxu0 0.0
    %319 = vmatprep.subr.mxu0 0.0
    %320 = vmatpush2.msra.mxu0 0.0
    %321 = vmatprep.subr.mxu0 0.0
    %322 = vmatpush2.msra.mxu0 0.0
    %323 = vmatprep.subr.mxu0 0.0
    %324 = vmatpush2.msra.mxu0 0.0
    %325 = vmatprep.subr.mxu0 0.0
    %326 = vmatpush2.msra.mxu0 0.0
    %327 = vmatprep.subr.mxu0 0.0
    %328 = vmatpush2.msra.mxu0 0.0
    %329 = vmatprep.subr.mxu0 0.0
    %330 = vmatpush2.msra.mxu0 0.0
    %331 = vmatprep.subr.mxu0 0.0
    %332 = vmatpush2.msra.mxu0 0.0
    %333 = vmatprep.subr.mxu0 0.0
    %334 = vmatpush2.msra.mxu0 0.0
    %335 = vmatprep.subr.mxu0 0.0
    %336 = vmatpush2.msra.mxu0 0.0
    %337 = vmatprep.subr.mxu0 0.0
    %338 = vmatpush2.msra.mxu0 0.0
    %339 = vmatprep.subr.mxu0 0.0
    %340 = vmatpush2.msra.mxu0 0.0
    %341 = vmatprep.subr.mxu0 0.0
    %342 = vmatpush2.msra.mxu0 0.0
    %343 = vmatprep.subr.mxu0 0.0
    %344 = vmatpush2.msra.mxu0 0.0
    %345 = vmatprep.subr.mxu0 0.0
    %346 = vmatpush2.msra.mxu0 0.0
    %347 = vmatprep.mubr.f32.mxu0 0.0
    %348 = vmatmul.mubr.f32.gmra.mxu0 %v259
    %v349 = vpop.f32.mrf.mxu0
    %v350 = vadd.f32 %v281, %v349
    %v351 = vpop.f32.mrf.mxu0
    %352 = vdwg.mxu0
    %353 = vst [vmem:[%s7] sm:$0xff] %v350
    // Predicated region
    $region42: #{_mlp_forward_jit.1} parent=1 // pred_check
      _
    $region43: #{_mlp_forward_jit.1} parent=1 // pred_check_branch
      %355 = sbr.rel (0) target = $region45
    $region44: #{_mlp_forward_jit.1} parent=1 // pred_region
      _
    $region45: #{_mlp_forward_jit.1} parent=1 // pred_fallthru
      _
    // Predicated region
    $region46: #{_mlp_forward_jit.1} parent=1 // pred_check
      _
    $region47: #{_mlp_forward_jit.1} parent=1 // pred_check_branch
      %357 = sbr.rel (0) target = $region49
    $region48: #{_mlp_forward_jit.1} parent=1 // pred_region
      _
    $region49: #{_mlp_forward_jit.1} parent=1 // pred_fallthru
      _
    %358 = vsyncpa [#allocation3], 1
    %359 = vsyncpa [#allocation5], 1

</llo_original>
